<compile_context>
chip_gen: v5e
topology: v5e:2x2
jax: 0.10.0
libtpu: 0.0.40
codegen_flags: <defaults>
</compile_context>

<pallas_src>
import functools

import jax
import jax.numpy as jnp
from jax.experimental import pallas as pl
from jax.experimental.pallas import tpu as pltpu

LANE = 128        # vreg lane width
SUBLANE = 8       # vreg sublane count (f32)
MLP_HIDDEN = 128  # fixed by the torch module


def _round_up(n, m):
    return ((n + m - 1) // m) * m


def rnn_model_kernel(x_ref, wih_ref, whh_ref, b_ref,
                     w1_ref, b1_ref, w2_ref, b2_ref, out_ref, *, seq_len):
    """Full forward pass on padded shapes.

    x_ref:   (T*Bp, Ip)    time-major flattened input
    wih_ref: (Ip, Hp)      input->hidden weight (transposed vs torch, zero-padded)
    whh_ref: (Hp, Hp)      hidden->hidden weight (transposed vs torch, zero-padded)
    b_ref:   (1, Hp)       b_ih + b_hh fused
    w1_ref:  (Hp, 128), b1_ref: (1, 128)
    w2_ref:  (128, Cp), b2_ref: (1, Cp)
    out_ref: (Bp, Cp)      logits (padded; sliced back in the wrapper)
    """
    TB, _ = x_ref.shape
    Bp = TB // seq_len

    # ---- Input projection hoisted out of the recurrence --------------------
    # One big MXU matmul over all timesteps; bias folded in once, so the serial
    # chain below carries no x@W_ih and no bias broadcast.
    xp = (jnp.dot(x_ref[...], wih_ref[...], preferred_element_type=jnp.float32)
          + b_ref[...])                                          # (T*Bp, Hp)

    w_hh = whh_ref[...]

    # ---- Recurrence, fully unrolled (static T) ------------------------------
    # Step 0: h0 == 0 so h1 = tanh(xp_0) -- no matmul needed.
    h = jnp.tanh(xp[0:Bp])
    for t in range(1, seq_len):  # static unroll; contiguous, sublane-aligned slices
        h = jnp.tanh(xp[t * Bp:(t + 1) * Bp] +
                     jnp.dot(h, w_hh, preferred_element_type=jnp.float32))

    # ---- Classifier: Linear -> ReLU -> Linear (on final hidden state) -------
    hid = jnp.maximum(
        jnp.dot(h, w1_ref[...], preferred_element_type=jnp.float32) + b1_ref[...],
        0.0)
    out_ref[...] = (jnp.dot(hid, w2_ref[...], preferred_element_type=jnp.float32)
                    + b2_ref[...])


def rnn_model_forward(x_btI, params):
    """x_btI: (B, T, I) float32, batch_first like the torch module. Returns (B, C)."""
    B, T, I = x_btI.shape
    H = params["w_hh"].shape[0]
    C = params["b2"].shape[-1]

    Bp = _round_up(B, SUBLANE)
    Ip = _round_up(I, LANE)
    Hp = _round_up(H, LANE)
    Cp = _round_up(C, LANE)

    pad2 = lambda a, r, c: jnp.pad(a, ((0, r - a.shape[0]), (0, c - a.shape[1])))

    # Zero-pad to lane/sublane-dense shapes (exact: padded rows/cols are zero,
    # padded hidden units stay at tanh(0)=0, padded batch rows are discarded),
    # then go time-major so per-step slices inside the kernel are contiguous.
    x_p = jnp.pad(x_btI, ((0, Bp - B), (0, 0), (0, Ip - I)))      # (Bp, T, Ip)
    x_tb = jnp.transpose(x_p, (1, 0, 2)).reshape(T * Bp, Ip)      # (T*Bp, Ip)

    w_ih = pad2(params["w_ih"], Ip, Hp)
    w_hh = pad2(params["w_hh"], Hp, Hp)
    b_h = pad2(params["b_h"], 1, Hp)
    w1 = pad2(params["w1"], Hp, MLP_HIDDEN)
    b1 = pad2(params["b1"], 1, MLP_HIDDEN)
    w2 = pad2(params["w2"], MLP_HIDDEN, Cp)
    b2 = pad2(params["b2"], 1, Cp)

    full = lambda shape: pl.BlockSpec(shape, lambda: (0,) * len(shape))

    flops = 2 * (T * Bp * Ip * Hp             # input projection
                 + (T - 1) * Bp * Hp * Hp     # recurrence (step 0 has no matmul)
                 + Bp * Hp * MLP_HIDDEN       # classifier layer 1
                 + Bp * MLP_HIDDEN * Cp)      # classifier layer 2
    bytes_accessed = 4 * (x_tb.size + w_ih.size + w_hh.size + b_h.size
                          + w1.size + b1.size + w2.size + b2.size + Bp * Cp)

    out = pl.pallas_call(
        functools.partial(rnn_model_kernel, seq_len=T),
        out_shape=jax.ShapeDtypeStruct((Bp, Cp), jnp.float32),
        in_specs=[
            full((T * Bp, Ip)),
            full((Ip, Hp)),
            full((Hp, Hp)),
            full((1, Hp)),
            full((Hp, MLP_HIDDEN)),
            full((1, MLP_HIDDEN)),
            full((MLP_HIDDEN, Cp)),
            full((1, Cp)),
        ],
        out_specs=full((Bp, Cp)),
        cost_estimate=pl.CostEstimate(
            flops=flops,
            transcendentals=T * Bp * Hp,
            bytes_accessed=bytes_accessed),
        compiler_params=pltpu.CompilerParams(
            vmem_limit_bytes=32 * 1024 * 1024),
    )(x_tb, w_ih, w_hh, b_h, w1, b1, w2, b2)

    return out[:B, :C]


def init_params(key, input_size, hidden_dim, num_classes):
    """Deterministic synthetic parameters (shapes follow nn.RNN / nn.Linear)."""
    ks = jax.random.split(key, 8)
    s_rnn = 1.0 / jnp.sqrt(hidden_dim)
    s_l1 = 1.0 / jnp.sqrt(hidden_dim)
    s_l2 = 1.0 / jnp.sqrt(128.0)
    u = lambda k, shape, s: jax.random.uniform(k, shape, jnp.float32, -s, s)
    return {
        # torch stores weight_ih_l0 as (H, I); we store transposed (I, H).
        "w_ih": u(ks[0], (input_size, hidden_dim), s_rnn),
        "w_hh": u(ks[1], (hidden_dim, hidden_dim), s_rnn),
        # b_ih + b_hh fused into one bias row.
        "b_h": u(ks[2], (1, hidden_dim), s_rnn) + u(ks[3], (1, hidden_dim), s_rnn),
        "w1": u(ks[4], (hidden_dim, 128), s_l1),
        "b1": u(ks[5], (1, 128), s_l1),
        "w2": u(ks[6], (128, num_classes), s_l2),
        "b2": u(ks[7], (1, num_classes), s_l2),
    }


def reference_forward(x_btI, params):
    """Pure-JAX reference mirroring the torch forward (for verification)."""
    B, T, I = x_btI.shape
    H = params["w_hh"].shape[0]
    h = jnp.zeros((B, H), jnp.float32)
    for t in range(T):
        h = jnp.tanh(x_btI[:, t, :] @ params["w_ih"] + h @ params["w_hh"]
                     + params["b_h"])
    hid = jnp.maximum(h @ params["w1"] + params["b1"], 0.0)
    return hid @ params["w2"] + params["b2"]


if __name__ == "__main__":
    # Small shapes consistent with the module's forward:
    # x: (batch, sequence_length, input_size)
    batch = 2
    seq_len = 8
    input_size = 16
    hidden_dim = 32
    num_classes = 10

    key = jax.random.PRNGKey(0)
    k_x, k_p = jax.random.split(key)
    x = jax.random.normal(k_x, (batch, seq_len, input_size), dtype=jnp.float32)
    params = init_params(k_p, input_size, hidden_dim, num_classes)

    out = rnn_model_forward(x, params)
    out = jax.block_until_ready(out)

    ref = reference_forward(x, params)
    assert out.shape == (batch, num_classes)
    assert jnp.allclose(out, ref, atol=1e-4, rtol=1e-4), "mismatch vs reference"

    print("KERNEL_OK")
</pallas_src>

<mosaic_0001>
module attributes {stable_mosaic.version = 11 : i64} {
  func.func @rnn_model_kernel(%arg0: memref<64x128xf32, #tpu.memory_space<vmem>>, %arg1: memref<128x128xf32, #tpu.memory_space<vmem>>, %arg2: memref<128x128xf32, #tpu.memory_space<vmem>>, %arg3: memref<1x128xf32, #tpu.memory_space<vmem>>, %arg4: memref<128x128xf32, #tpu.memory_space<vmem>>, %arg5: memref<1x128xf32, #tpu.memory_space<vmem>>, %arg6: memref<128x128xf32, #tpu.memory_space<vmem>>, %arg7: memref<1x128xf32, #tpu.memory_space<vmem>>, %arg8: memref<8x128xf32, #tpu.memory_space<vmem>>) attributes {dimension_semantics = [], scalar_prefetch = 0 : i64, scratch_operands = 0 : i64, tpu.core_type = #tpu.core_type<tc>} {
    %c0 = arith.constant 0 : index
    %c0_0 = arith.constant 0 : index
    %0 = vector.load %arg0[%c0, %c0_0] : memref<64x128xf32, #tpu.memory_space<vmem>>, vector<64x128xf32>
    %c0_1 = arith.constant 0 : index
    %c0_2 = arith.constant 0 : index
    %1 = vector.load %arg1[%c0_1, %c0_2] : memref<128x128xf32, #tpu.memory_space<vmem>>, vector<128x128xf32>
    %cst = arith.constant dense<0.000000e+00> : vector<64x128xf32>
    %2 = tpu.matmul %0, %1, %cst {dimension_numbers = #tpu.dot_dimension_numbers<[1], [0], [0], [1], [0, 0, 1, 1], [], []>} : vector<64x128xf32>, vector<128x128xf32>, vector<64x128xf32> -> vector<64x128xf32>
    %c0_3 = arith.constant 0 : index
    %c0_4 = arith.constant 0 : index
    %3 = vector.load %arg3[%c0_3, %c0_4] : memref<1x128xf32, #tpu.memory_space<vmem>>, vector<1x128xf32>
    %4 = vector.broadcast %3 : vector<1x128xf32> to vector<64x128xf32>
    %5 = arith.addf %2, %4 : vector<64x128xf32>
    %c0_5 = arith.constant 0 : index
    %c0_6 = arith.constant 0 : index
    %6 = vector.load %arg2[%c0_5, %c0_6] : memref<128x128xf32, #tpu.memory_space<vmem>>, vector<128x128xf32>
    %7 = vector.extract_strided_slice %5 {offsets = [0, 0], sizes = [8, 128], strides = [1, 1]} : vector<64x128xf32> to vector<8x128xf32>
    %8 = math.tanh %7 : vector<8x128xf32>
    %9 = vector.extract_strided_slice %5 {offsets = [8, 0], sizes = [8, 128], strides = [1, 1]} : vector<64x128xf32> to vector<8x128xf32>
    %cst_7 = arith.constant dense<0.000000e+00> : vector<8x128xf32>
    %10 = tpu.matmul %8, %6, %cst_7 {dimension_numbers = #tpu.dot_dimension_numbers<[1], [0], [0], [1], [0, 0, 1, 1], [], []>} : vector<8x128xf32>, vector<128x128xf32>, vector<8x128xf32> -> vector<8x128xf32>
    %11 = arith.addf %9, %10 : vector<8x128xf32>
    %12 = math.tanh %11 : vector<8x128xf32>
    %13 = vector.extract_strided_slice %5 {offsets = [16, 0], sizes = [8, 128], strides = [1, 1]} : vector<64x128xf32> to vector<8x128xf32>
    %cst_8 = arith.constant dense<0.000000e+00> : vector<8x128xf32>
    %14 = tpu.matmul %12, %6, %cst_8 {dimension_numbers = #tpu.dot_dimension_numbers<[1], [0], [0], [1], [0, 0, 1, 1], [], []>} : vector<8x128xf32>, vector<128x128xf32>, vector<8x128xf32> -> vector<8x128xf32>
    %15 = arith.addf %13, %14 : vector<8x128xf32>
    %16 = math.tanh %15 : vector<8x128xf32>
    %17 = vector.extract_strided_slice %5 {offsets = [24, 0], sizes = [8, 128], strides = [1, 1]} : vector<64x128xf32> to vector<8x128xf32>
    %cst_9 = arith.constant dense<0.000000e+00> : vector<8x128xf32>
    %18 = tpu.matmul %16, %6, %cst_9 {dimension_numbers = #tpu.dot_dimension_numbers<[1], [0], [0], [1], [0, 0, 1, 1], [], []>} : vector<8x128xf32>, vector<128x128xf32>, vector<8x128xf32> -> vector<8x128xf32>
    %19 = arith.addf %17, %18 : vector<8x128xf32>
    %20 = math.tanh %19 : vector<8x128xf32>
    %21 = vector.extract_strided_slice %5 {offsets = [32, 0], sizes = [8, 128], strides = [1, 1]} : vector<64x128xf32> to vector<8x128xf32>
    %cst_10 = arith.constant dense<0.000000e+00> : vector<8x128xf32>
    %22 = tpu.matmul %20, %6, %cst_10 {dimension_numbers = #tpu.dot_dimension_numbers<[1], [0], [0], [1], [0, 0, 1, 1], [], []>} : vector<8x128xf32>, vector<128x128xf32>, vector<8x128xf32> -> vector<8x128xf32>
    %23 = arith.addf %21, %22 : vector<8x128xf32>
    %24 = math.tanh %23 : vector<8x128xf32>
    %25 = vector.extract_strided_slice %5 {offsets = [40, 0], sizes = [8, 128], strides = [1, 1]} : vector<64x128xf32> to vector<8x128xf32>
    %cst_11 = arith.constant dense<0.000000e+00> : vector<8x128xf32>
    %26 = tpu.matmul %24, %6, %cst_11 {dimension_numbers = #tpu.dot_dimension_numbers<[1], [0], [0], [1], [0, 0, 1, 1], [], []>} : vector<8x128xf32>, vector<128x128xf32>, vector<8x128xf32> -> vector<8x128xf32>
    %27 = arith.addf %25, %26 : vector<8x128xf32>
    %28 = math.tanh %27 : vector<8x128xf32>
    %29 = vector.extract_strided_slice %5 {offsets = [48, 0], sizes = [8, 128], strides = [1, 1]} : vector<64x128xf32> to vector<8x128xf32>
    %cst_12 = arith.constant dense<0.000000e+00> : vector<8x128xf32>
    %30 = tpu.matmul %28, %6, %cst_12 {dimension_numbers = #tpu.dot_dimension_numbers<[1], [0], [0], [1], [0, 0, 1, 1], [], []>} : vector<8x128xf32>, vector<128x128xf32>, vector<8x128xf32> -> vector<8x128xf32>
    %31 = arith.addf %29, %30 : vector<8x128xf32>
    %32 = math.tanh %31 : vector<8x128xf32>
    %33 = vector.extract_strided_slice %5 {offsets = [56, 0], sizes = [8, 128], strides = [1, 1]} : vector<64x128xf32> to vector<8x128xf32>
    %cst_13 = arith.constant dense<0.000000e+00> : vector<8x128xf32>
    %34 = tpu.matmul %32, %6, %cst_13 {dimension_numbers = #tpu.dot_dimension_numbers<[1], [0], [0], [1], [0, 0, 1, 1], [], []>} : vector<8x128xf32>, vector<128x128xf32>, vector<8x128xf32> -> vector<8x128xf32>
    %35 = arith.addf %33, %34 : vector<8x128xf32>
    %36 = math.tanh %35 : vector<8x128xf32>
    %c0_14 = arith.constant 0 : index
    %c0_15 = arith.constant 0 : index
    %37 = vector.load %arg4[%c0_14, %c0_15] : memref<128x128xf32, #tpu.memory_space<vmem>>, vector<128x128xf32>
    %cst_16 = arith.constant dense<0.000000e+00> : vector<8x128xf32>
    %38 = tpu.matmul %36, %37, %cst_16 {dimension_numbers = #tpu.dot_dimension_numbers<[1], [0], [0], [1], [0, 0, 1, 1], [], []>} : vector<8x128xf32>, vector<128x128xf32>, vector<8x128xf32> -> vector<8x128xf32>
    %c0_17 = arith.constant 0 : index
    %c0_18 = arith.constant 0 : index
    %39 = vector.load %arg5[%c0_17, %c0_18] : memref<1x128xf32, #tpu.memory_space<vmem>>, vector<1x128xf32>
    %40 = vector.broadcast %39 : vector<1x128xf32> to vector<8x128xf32>
    %41 = arith.addf %38, %40 : vector<8x128xf32>
    %cst_19 = arith.constant 0.000000e+00 : f32
    %42 = vector.broadcast %cst_19 : f32 to vector<8x128xf32>
    %43 = arith.maximumf %41, %42 : vector<8x128xf32>
    %c0_20 = arith.constant 0 : index
    %c0_21 = arith.constant 0 : index
    %44 = vector.load %arg6[%c0_20, %c0_21] : memref<128x128xf32, #tpu.memory_space<vmem>>, vector<128x128xf32>
    %cst_22 = arith.constant dense<0.000000e+00> : vector<8x128xf32>
    %45 = tpu.matmul %43, %44, %cst_22 {dimension_numbers = #tpu.dot_dimension_numbers<[1], [0], [0], [1], [0, 0, 1, 1], [], []>} : vector<8x128xf32>, vector<128x128xf32>, vector<8x128xf32> -> vector<8x128xf32>
    %c0_23 = arith.constant 0 : index
    %c0_24 = arith.constant 0 : index
    %46 = vector.load %arg7[%c0_23, %c0_24] : memref<1x128xf32, #tpu.memory_space<vmem>>, vector<1x128xf32>
    %47 = vector.broadcast %46 : vector<1x128xf32> to vector<8x128xf32>
    %48 = arith.addf %45, %47 : vector<8x128xf32>
    %c0_25 = arith.constant 0 : index
    %c0_26 = arith.constant 0 : index
    %49 = vector.load %arg8[%c0_25, %c0_26] : memref<8x128xf32, #tpu.memory_space<vmem>>, vector<8x128xf32>
    tpu.vector_store %arg8[%c0_25, %c0_26], %48 {strides = array<i32>} : memref<8x128xf32, #tpu.memory_space<vmem>>, vector<8x128xf32>,
    return
  }
}

</mosaic_0001>

<llo_original>
// kernel: tpu_custom_call.1
$region0: #{tpu_custom_call.1}
  #allocation0 [shape = 'u32[]', space=smem, size = 0x4, offset = 0x4, fixed_abs, tag = 'smem constant byte address 0x4 - core index']
  #allocation1 [shape = 'u32[72,128]{1,0:T(1,128)}', space=vmem, size = 0x9000, scoped, tag = 'internal scratch']
  %s0 = inlined_call_operand.hbm [shape: f32[64,128], index: 0, kind: input, shape index: {}]
  %s1 = inlined_call_operand.hbm [shape: f32[128,128], index: 1, kind: input, shape index: {}]
  %s2 = inlined_call_operand.hbm [shape: f32[128,128], index: 2, kind: input, shape index: {}]
  %s3 = inlined_call_operand.vmem [shape: f32[1,128], index: 3, kind: input, shape index: {}]
  %s4 = inlined_call_operand.hbm [shape: f32[128,128], index: 4, kind: input, shape index: {}]
  %s5 = inlined_call_operand.vmem [shape: f32[1,128], index: 5, kind: input, shape index: {}]
  %s6 = inlined_call_operand.hbm [shape: f32[128,128], index: 6, kind: input, shape index: {}]
  %s7 = inlined_call_operand.vmem [shape: f32[1,128], index: 7, kind: input, shape index: {}]
  %s8 = inlined_call_operand.hbm [shape: f32[8,128], index: 8, kind: output, shape index: {}]
  %s9 = sld [smem:[#allocation0]]
  $region62: #{tpu_custom_call.1} parent=0
    _
  %s11 = ssub.s32 1, %s9
  %s12 = scalar_select 0, %s11, %s9
  $region1: #{tpu_custom_call.1} parent=0
    #allocation2 [shape = 'u8[32768]{0}', space=vmem, size = 0x8000, scoped, tag = 'input window, operand 0, single buffered']
    #allocation3 [shape = 's32[1]{0}', space=sflag, size = 0x4, scoped, tag = 'scoped memory for tpu_custom_call.1']
    #allocation4 [shape = 's32[1]{0}', space=sflag, size = 0x4, scoped, tag = 'scoped memory for tpu_custom_call.1']
    #allocation5 [shape = 'u8[65536]{0}', space=vmem, size = 0x10000, scoped, tag = 'input window, operand 1, single buffered']
    #allocation6 [shape = 's32[1]{0}', space=sflag, size = 0x4, scoped, tag = 'scoped memory for tpu_custom_call.1']
    #allocation7 [shape = 'u8[65536]{0}', space=vmem, size = 0x10000, scoped, tag = 'input window, operand 2, single buffered']
    #allocation8 [shape = 'u8[65536]{0}', space=vmem, size = 0x10000, scoped, tag = 'input window, operand 4, single buffered']
    #allocation9 [shape = 's32[1]{0}', space=sflag, size = 0x4, scoped, tag = 'scoped memory for tpu_custom_call.1']
    #allocation10 [shape = 'u8[65536]{0}', space=vmem, size = 0x10000, scoped, tag = 'input window, operand 6, single buffered']
    #allocation11 [shape = 'u8[4096]{0}', space=vmem, size = 0x1000, scoped, tag = 'output window, operand 0, single buffered']
    %13 = vsyncpa [#allocation3], 0
    %14 = vsyncpa [#allocation6], 0
    %15 = vsyncpa [#allocation9], 0
    %16 = vsyncpa [#allocation4], 0
    // Predicated region
    $region2: #{tpu_custom_call.1} parent=1 // pred_check
      _
    $region3: #{tpu_custom_call.1} parent=1 // pred_check_branch
      %18 = sbr.rel (0) target = $region5
    $region4: #{tpu_custom_call.1} parent=1 // pred_region
      %20 = vsyncadd [#allocation3], 0
      %s21 = sshll.u32 %s0, 4
      %s22 = int_to_ptr.hbm [resolvable:$true] %s21
      %s23 = sshll.u32 [#allocation2], 4
      %s24 = int_to_ptr.vmem [resolvable:$true] %s23
      %29 = dma.hbm_to_vmem [thread:$0]  %s22, 1024, %s24, [#allocation3], 128, 128, 8
    $region5: #{tpu_custom_call.1} parent=1 // pred_fallthru
      _
    // Predicated region
    $region6: #{tpu_custom_call.1} parent=1 // pred_check
      _
    $region7: #{tpu_custom_call.1} parent=1 // pred_check_branch
      %31 = sbr.rel (0) target = $region9
    $region8: #{tpu_custom_call.1} parent=1 // pred_region
      %33 = vsyncadd [#allocation6], 0
      %s34 = sshll.u32 %s1, 4
      %s35 = int_to_ptr.hbm [resolvable:$true] %s34
      %s36 = sshll.u32 [#allocation5], 4
      %s37 = int_to_ptr.vmem [resolvable:$true] %s36
      %42 = dma.hbm_to_vmem [thread:$0]  %s35, 2048, %s37, [#allocation6], 128, 128, 8
    $region9: #{tpu_custom_call.1} parent=1 // pred_fallthru
      _
    // Predicated region
    $region10: #{tpu_custom_call.1} parent=1 // pred_check
      _
    $region11: #{tpu_custom_call.1} parent=1 // pred_check_branch
      %44 = sbr.rel (0) target = $region13
    $region12: #{tpu_custom_call.1} parent=1 // pred_region
      %46 = vsyncadd [#allocation6], 0
      %s47 = sshll.u32 %s2, 4
      %s48 = int_to_ptr.hbm [resolvable:$true] %s47
      %s49 = sshll.u32 [#allocation7], 4
      %s50 = int_to_ptr.vmem [resolvable:$true] %s49
      %55 = dma.hbm_to_vmem [thread:$0]  %s48, 2048, %s50, [#allocation6], 128, 128, 8
    $region13: #{tpu_custom_call.1} parent=1 // pred_fallthru
      _
    // Predicated region
    $region14: #{tpu_custom_call.1} parent=1 // pred_check
      _
    $region15: #{tpu_custom_call.1} parent=1 // pred_check_branch
      %57 = sbr.rel (0) target = $region17
    $region16: #{tpu_custom_call.1} parent=1 // pred_region
      _
    $region17: #{tpu_custom_call.1} parent=1 // pred_fallthru
      _
    // Predicated region
    $region18: #{tpu_custom_call.1} parent=1 // pred_check
      _
    $region19: #{tpu_custom_call.1} parent=1 // pred_check_branch
      %59 = sbr.rel (0) target = $region21
    $region20: #{tpu_custom_call.1} parent=1 // pred_region
      %61 = vsyncadd [#allocation9], 0
      %s62 = sshll.u32 %s4, 4
      %s63 = int_to_ptr.hbm [resolvable:$true] %s62
      %s64 = sshll.u32 [#allocation8], 4
      %s65 = int_to_ptr.vmem [resolvable:$true] %s64
      %70 = dma.hbm_to_vmem [thread:$0]  %s63, 2048, %s65, [#allocation9], 128, 128, 8
    $region21: #{tpu_custom_call.1} parent=1 // pred_fallthru
      _
    // Predicated region
    $region22: #{tpu_custom_call.1} parent=1 // pred_check
      _
    $region23: #{tpu_custom_call.1} parent=1 // pred_check_branch
      %72 = sbr.rel (0) target = $region25
    $region24: #{tpu_custom_call.1} parent=1 // pred_region
      _
    $region25: #{tpu_custom_call.1} parent=1 // pred_fallthru
      _
    // Predicated region
    $region26: #{tpu_custom_call.1} parent=1 // pred_check
      _
    $region27: #{tpu_custom_call.1} parent=1 // pred_check_branch
      %74 = sbr.rel (0) target = $region29
    $region28: #{tpu_custom_call.1} parent=1 // pred_region
      %76 = vsyncadd [#allocation9], 0
      %s77 = sshll.u32 %s6, 4
      %s78 = int_to_ptr.hbm [resolvable:$true] %s77
      %s79 = sshll.u32 [#allocation10], 4
      %s80 = int_to_ptr.vmem [resolvable:$true] %s79
      %85 = dma.hbm_to_vmem [thread:$0]  %s78, 2048, %s80, [#allocation9], 128, 128, 8
    $region29: #{tpu_custom_call.1} parent=1 // pred_fallthru
      _
    // Predicated region
    $region30: #{tpu_custom_call.1} parent=1 // pred_check
      _
    $region31: #{tpu_custom_call.1} parent=1 // pred_check_branch
      %87 = sbr.rel (0) target = $region33
    $region32: #{tpu_custom_call.1} parent=1 // pred_region
      _
    $region33: #{tpu_custom_call.1} parent=1 // pred_fallthru
      _
    // Predicated region
    $region34: #{tpu_custom_call.1} parent=1 // pred_check
      _
    $region35: #{tpu_custom_call.1} parent=1 // pred_check_branch
      %89 = sbr.rel (0) target = $region37
    $region36: #{tpu_custom_call.1} parent=1 // pred_region
      %91 = dma.done [#allocation3], 1024
    $region37: #{tpu_custom_call.1} parent=1 // pred_fallthru
      _
    // Predicated region
    $region38: #{tpu_custom_call.1} parent=1 // pred_check
      _
    $region39: #{tpu_custom_call.1} parent=1 // pred_check_branch
      %93 = sbr.rel (0) target = $region41
    $region40: #{tpu_custom_call.1} parent=1 // pred_region
      %95 = dma.done [#allocation6], 2048
    $region41: #{tpu_custom_call.1} parent=1 // pred_fallthru
      _
    // Predicated region
    $region42: #{tpu_custom_call.1} parent=1 // pred_check
      _
    $region43: #{tpu_custom_call.1} parent=1 // pred_check_branch
      %97 = sbr.rel (0) target = $region45
    $region44: #{tpu_custom_call.1} parent=1 // pred_region
      %99 = dma.done [#allocation6], 2048
    $region45: #{tpu_custom_call.1} parent=1 // pred_fallthru
      _
    // Predicated region
    $region46: #{tpu_custom_call.1} parent=1 // pred_check
      _
    $region47: #{tpu_custom_call.1} parent=1 // pred_check_branch
      %101 = sbr.rel (0) target = $region49
    $region48: #{tpu_custom_call.1} parent=1 // pred_region
      %103 = dma.done [#allocation9], 2048
    $region49: #{tpu_custom_call.1} parent=1 // pred_fallthru
      _
    // Predicated region
    $region50: #{tpu_custom_call.1} parent=1 // pred_check
      _
    $region51: #{tpu_custom_call.1} parent=1 // pred_check_branch
      %105 = sbr.rel (0) target = $region53
    $region52: #{tpu_custom_call.1} parent=1 // pred_region
      %107 = dma.done [#allocation9], 2048
    $region53: #{tpu_custom_call.1} parent=1 // pred_fallthru
      _
    %v108 = vld [vmem:[#allocation2] sm:$0xff]
    %v109 = vld [vmem:[#allocation2 + $0x8] sm:$0xff]
    %v110 = vld [vmem:[#allocation2 + $0x10] sm:$0xff]
    %v111 = vld [vmem:[#allocation2 + $0x18] sm:$0xff]
    %v112 = vld [vmem:[#allocation2 + $0x20] sm:$0xff]
    %v113 = vld [vmem:[#allocation2 + $0x28] sm:$0xff]
    %v114 = vld [vmem:[#allocation2 + $0x30] sm:$0xff]
    %v115 = vld [vmem:[#allocation2 + $0x38] sm:$0xff]
    %v116 = vld [vmem:[#allocation5] sm:$0xff]
    %v117 = vld [vmem:[#allocation5 + $0x8] sm:$0xff]
    %v118 = vld [vmem:[#allocation5 + $0x10] sm:$0xff]
    %v119 = vld [vmem:[#allocation5 + $0x18] sm:$0xff]
    %v120 = vld [vmem:[#allocation5 + $0x20] sm:$0xff]
    %v121 = vld [vmem:[#allocation5 + $0x28] sm:$0xff]
    %v122 = vld [vmem:[#allocation5 + $0x30] sm:$0xff]
    %v123 = vld [vmem:[#allocation5 + $0x38] sm:$0xff]
    %v124 = vld [vmem:[#allocation5 + $0x40] sm:$0xff]
    %v125 = vld [vmem:[#allocation5 + $0x48] sm:$0xff]
    %v126 = vld [vmem:[#allocation5 + $0x50] sm:$0xff]
    %v127 = vld [vmem:[#allocation5 + $0x58] sm:$0xff]
    %v128 = vld [vmem:[#allocation5 + $0x60] sm:$0xff]
    %v129 = vld [vmem:[#allocation5 + $0x68] sm:$0xff]
    %v130 = vld [vmem:[#allocation5 + $0x70] sm:$0xff]
    %v131 = vld [vmem:[#allocation5 + $0x78] sm:$0xff]
    %v132 = vld [vmem:[%s3] sm:$0x1]
    %v134 = vperm.slane %v132, 0
    %136 = vmatpush.msra.mxu0 %v131
    %137 = vmatpush.msra.mxu0 %v130
    %138 = vmatpush.msra.mxu0 %v129
    %139 = vmatpush.msra.mxu0 %v128
    %140 = vmatpush.msra.mxu0 %v127
    %141 = vmatpush.msra.mxu0 %v126
    %142 = vmatpush.msra.mxu0 %v125
    %143 = vmatpush.msra.mxu0 %v124
    %144 = vmatpush.msra.mxu0 %v123
    %145 = vmatpush.msra.mxu0 %v122
    %146 = vmatpush.msra.mxu0 %v121
    %147 = vmatpush.msra.mxu0 %v120
    %148 = vmatpush.msra.mxu0 %v119
    %149 = vmatpush.msra.mxu0 %v118
    %150 = vmatpush.msra.mxu0 %v117
    %151 = vmatpush.msra.mxu0 %v116
    %152 = vmatmul.f32.gmra.mxu0 %v108
    %v153 = vpop.f32.mrf.mxu0
    %v154 = vadd.f32 %v134, %v153
    %155 = vmatmul.f32.gmra.mxu0 %v109
    %v156 = vpop.f32.mrf.mxu0
    %v157 = vadd.f32 %v134, %v156
    %158 = vmatmul.f32.gmra.mxu0 %v110
    %v159 = vpop.f32.mrf.mxu0
    %v160 = vadd.f32 %v134, %v159
    %161 = vmatmul.f32.gmra.mxu0 %v111
    %v162 = vpop.f32.mrf.mxu0
    %v163 = vadd.f32 %v134, %v162
    %164 = vmatmul.f32.gmra.mxu0 %v112
    %v165 = vpop.f32.mrf.mxu0
    %v166 = vadd.f32 %v134, %v165
    %167 = vmatmul.f32.gmra.mxu0 %v113
    %v168 = vpop.f32.mrf.mxu0
    %v169 = vadd.f32 %v134, %v168
    %170 = vmatmul.f32.gmra.mxu0 %v114
    %v171 = vpop.f32.mrf.mxu0
    %v172 = vadd.f32 %v134, %v171
    %173 = vmatmul.f32.gmra.mxu0 %v115
    %v174 = vpop.f32.mrf.mxu0
    %v175 = vadd.f32 %v134, %v174
    %176 = vdwg.mxu0
    %v177 = vld [vmem:[#allocation7] sm:$0xff]
    %v178 = vld [vmem:[#allocation7 + $0x8] sm:$0xff]
    %v179 = vld [vmem:[#allocation7 + $0x10] sm:$0xff]
    %v180 = vld [vmem:[#allocation7 + $0x18] sm:$0xff]
    %v181 = vld [vmem:[#allocation7 + $0x20] sm:$0xff]
    %v182 = vld [vmem:[#allocation7 + $0x28] sm:$0xff]
    %v183 = vld [vmem:[#allocation7 + $0x30] sm:$0xff]
    %v184 = vld [vmem:[#allocation7 + $0x38] sm:$0xff]
    %v185 = vld [vmem:[#allocation7 + $0x40] sm:$0xff]
    %v186 = vld [vmem:[#allocation7 + $0x48] sm:$0xff]
    %v187 = vld [vmem:[#allocation7 + $0x50] sm:$0xff]
    %v188 = vld [vmem:[#allocation7 + $0x58] sm:$0xff]
    %v189 = vld [vmem:[#allocation7 + $0x60] sm:$0xff]
    %v190 = vld [vmem:[#allocation7 + $0x68] sm:$0xff]
    %v191 = vld [vmem:[#allocation7 + $0x70] sm:$0xff]
    %v192 = vld [vmem:[#allocation7 + $0x78] sm:$0xff]
    %v193 = vtanh.pop %v154
    %194 = vmatpush.msra.mxu0 %v192
    %195 = vmatpush.msra.mxu0 %v191
    %196 = vmatpush.msra.mxu0 %v190
    %197 = vmatpush.msra.mxu0 %v189
    %198 = vmatpush.msra.mxu0 %v188
    %199 = vmatpush.msra.mxu0 %v187
    %200 = vmatpush.msra.mxu0 %v186
    %201 = vmatpush.msra.mxu0 %v185
    %202 = vmatpush.msra.mxu0 %v184
    %203 = vmatpush.msra.mxu0 %v183
    %204 = vmatpush.msra.mxu0 %v182
    %205 = vmatpush.msra.mxu0 %v181
    %206 = vmatpush.msra.mxu0 %v180
    %207 = vmatpush.msra.mxu0 %v179
    %208 = vmatpush.msra.mxu0 %v178
    %209 = vmatpush.msra.mxu0 %v177
    %210 = vmatmul.f32.gmra.mxu0 %v193
    %v211 = vpop.f32.mrf.mxu0
    %v212 = vadd.f32 0.0, %v211
    %213 = vdwg.mxu0
    %v214 = vadd.f32 %v157, %v212
    %v215 = vtanh.pop %v214
    %216 = vmatpush.msra.mxu0 %v192
    %217 = vmatpush.msra.mxu0 %v191
    %218 = vmatpush.msra.mxu0 %v190
    %219 = vmatpush.msra.mxu0 %v189
    %220 = vmatpush.msra.mxu0 %v188
    %221 = vmatpush.msra.mxu0 %v187
    %222 = vmatpush.msra.mxu0 %v186
    %223 = vmatpush.msra.mxu0 %v185
    %224 = vmatpush.msra.mxu0 %v184
    %225 = vmatpush.msra.mxu0 %v183
    %226 = vmatpush.msra.mxu0 %v182
    %227 = vmatpush.msra.mxu0 %v181
    %228 = vmatpush.msra.mxu0 %v180
    %229 = vmatpush.msra.mxu0 %v179
    %230 = vmatpush.msra.mxu0 %v178
    %231 = vmatpush.msra.mxu0 %v177
    %232 = vmatmul.f32.gmra.mxu0 %v215
    %v233 = vpop.f32.mrf.mxu0
    %v234 = vadd.f32 0.0, %v233
    %235 = vdwg.mxu0
    %v236 = vadd.f32 %v160, %v234
    %v237 = vtanh.pop %v236
    %238 = vmatpush.msra.mxu0 %v192
    %239 = vmatpush.msra.mxu0 %v191
    %240 = vmatpush.msra.mxu0 %v190
    %241 = vmatpush.msra.mxu0 %v189
    %242 = vmatpush.msra.mxu0 %v188
    %243 = vmatpush.msra.mxu0 %v187
    %244 = vmatpush.msra.mxu0 %v186
    %245 = vmatpush.msra.mxu0 %v185
    %246 = vmatpush.msra.mxu0 %v184
    %247 = vmatpush.msra.mxu0 %v183
    %248 = vmatpush.msra.mxu0 %v182
    %249 = vmatpush.msra.mxu0 %v181
    %250 = vmatpush.msra.mxu0 %v180
    %251 = vmatpush.msra.mxu0 %v179
    %252 = vmatpush.msra.mxu0 %v178
    %253 = vmatpush.msra.mxu0 %v177
    %254 = vmatmul.f32.gmra.mxu0 %v237
    %v255 = vpop.f32.mrf.mxu0
    %v256 = vadd.f32 0.0, %v255
    %257 = vdwg.mxu0
    %v258 = vadd.f32 %v163, %v256
    %v259 = vtanh.pop %v258
    %260 = vmatpush.msra.mxu0 %v192
    %261 = vmatpush.msra.mxu0 %v191
    %262 = vmatpush.msra.mxu0 %v190
    %263 = vmatpush.msra.mxu0 %v189
    %264 = vmatpush.msra.mxu0 %v188
    %265 = vmatpush.msra.mxu0 %v187
    %266 = vmatpush.msra.mxu0 %v186
    %267 = vmatpush.msra.mxu0 %v185
    %268 = vmatpush.msra.mxu0 %v184
    %269 = vmatpush.msra.mxu0 %v183
    %270 = vmatpush.msra.mxu0 %v182
    %271 = vmatpush.msra.mxu0 %v181
    %272 = vmatpush.msra.mxu0 %v180
    %273 = vmatpush.msra.mxu0 %v179
    %274 = vmatpush.msra.mxu0 %v178
    %275 = vmatpush.msra.mxu0 %v177
    %276 = vmatmul.f32.gmra.mxu0 %v259
    %v277 = vpop.f32.mrf.mxu0
    %v278 = vadd.f32 0.0, %v277
    %279 = vdwg.mxu0
    %v280 = vadd.f32 %v166, %v278
    %v281 = vtanh.pop %v280
    %282 = vmatpush.msra.mxu0 %v192
    %283 = vmatpush.msra.mxu0 %v191
    %284 = vmatpush.msra.mxu0 %v190
    %285 = vmatpush.msra.mxu0 %v189
    %286 = vmatpush.msra.mxu0 %v188
    %287 = vmatpush.msra.mxu0 %v187
    %288 = vmatpush.msra.mxu0 %v186
    %289 = vmatpush.msra.mxu0 %v185
    %290 = vmatpush.msra.mxu0 %v184
    %291 = vmatpush.msra.mxu0 %v183
    %292 = vmatpush.msra.mxu0 %v182
    %293 = vmatpush.msra.mxu0 %v181
    %294 = vmatpush.msra.mxu0 %v180
    %295 = vmatpush.msra.mxu0 %v179
    %296 = vmatpush.msra.mxu0 %v178
    %297 = vmatpush.msra.mxu0 %v177
    %298 = vmatmul.f32.gmra.mxu0 %v281
    %v299 = vpop.f32.mrf.mxu0
    %v300 = vadd.f32 0.0, %v299
    %301 = vdwg.mxu0
    %v302 = vadd.f32 %v169, %v300
    %v303 = vtanh.pop %v302
    %304 = vmatpush.msra.mxu0 %v192
    %305 = vmatpush.msra.mxu0 %v191
    %306 = vmatpush.msra.mxu0 %v190
    %307 = vmatpush.msra.mxu0 %v189
    %308 = vmatpush.msra.mxu0 %v188
    %309 = vmatpush.msra.mxu0 %v187
    %310 = vmatpush.msra.mxu0 %v186
    %311 = vmatpush.msra.mxu0 %v185
    %312 = vmatpush.msra.mxu0 %v184
    %313 = vmatpush.msra.mxu0 %v183
    %314 = vmatpush.msra.mxu0 %v182
    %315 = vmatpush.msra.mxu0 %v181
    %316 = vmatpush.msra.mxu0 %v180
    %317 = vmatpush.msra.mxu0 %v179
    %318 = vmatpush.msra.mxu0 %v178
    %319 = vmatpush.msra.mxu0 %v177
    %320 = vmatmul.f32.gmra.mxu0 %v303
    %v321 = vpop.f32.mrf.mxu0
    %v322 = vadd.f32 0.0, %v321
    %323 = vdwg.mxu0
    %v324 = vadd.f32 %v172, %v322
    %v325 = vtanh.pop %v324
    %326 = vmatpush.msra.mxu0 %v192
    %327 = vmatpush.msra.mxu0 %v191
    %328 = vmatpush.msra.mxu0 %v190
    %329 = vmatpush.msra.mxu0 %v189
    %330 = vmatpush.msra.mxu0 %v188
    %331 = vmatpush.msra.mxu0 %v187
    %332 = vmatpush.msra.mxu0 %v186
    %333 = vmatpush.msra.mxu0 %v185
    %334 = vmatpush.msra.mxu0 %v184
    %335 = vmatpush.msra.mxu0 %v183
    %336 = vmatpush.msra.mxu0 %v182
    %337 = vmatpush.msra.mxu0 %v181
    %338 = vmatpush.msra.mxu0 %v180
    %339 = vmatpush.msra.mxu0 %v179
    %340 = vmatpush.msra.mxu0 %v178
    %341 = vmatpush.msra.mxu0 %v177
    %342 = vmatmul.f32.gmra.mxu0 %v325
    %v343 = vpop.f32.mrf.mxu0
    %v344 = vadd.f32 0.0, %v343
    %345 = vdwg.mxu0
    %v346 = vadd.f32 %v175, %v344
    %v347 = vtanh.pop %v346
    %v348 = vld [vmem:[#allocation8] sm:$0xff]
    %v349 = vld [vmem:[#allocation8 + $0x8] sm:$0xff]
    %v350 = vld [vmem:[#allocation8 + $0x10] sm:$0xff]
    %v351 = vld [vmem:[#allocation8 + $0x18] sm:$0xff]
    %v352 = vld [vmem:[#allocation8 + $0x20] sm:$0xff]
    %v353 = vld [vmem:[#allocation8 + $0x28] sm:$0xff]
    %v354 = vld [vmem:[#allocation8 + $0x30] sm:$0xff]
    %v355 = vld [vmem:[#allocation8 + $0x38] sm:$0xff]
    %v356 = vld [vmem:[#allocation8 + $0x40] sm:$0xff]
    %v357 = vld [vmem:[#allocation8 + $0x48] sm:$0xff]
    %v358 = vld [vmem:[#allocation8 + $0x50] sm:$0xff]
    %v359 = vld [vmem:[#allocation8 + $0x58] sm:$0xff]
    %v360 = vld [vmem:[#allocation8 + $0x60] sm:$0xff]
    %v361 = vld [vmem:[#allocation8 + $0x68] sm:$0xff]
    %v362 = vld [vmem:[#allocation8 + $0x70] sm:$0xff]
    %v363 = vld [vmem:[#allocation8 + $0x78] sm:$0xff]
    %v364 = vld [vmem:[%s5] sm:$0x1]
    %v366 = vperm.slane %v364, 0
    %368 = vmatpush.msra.mxu0 %v363
    %369 = vmatpush.msra.mxu0 %v362
    %370 = vmatpush.msra.mxu0 %v361
    %371 = vmatpush.msra.mxu0 %v360
    %372 = vmatpush.msra.mxu0 %v359
    %373 = vmatpush.msra.mxu0 %v358
    %374 = vmatpush.msra.mxu0 %v357
    %375 = vmatpush.msra.mxu0 %v356
    %376 = vmatpush.msra.mxu0 %v355
    %377 = vmatpush.msra.mxu0 %v354
    %378 = vmatpush.msra.mxu0 %v353
    %379 = vmatpush.msra.mxu0 %v352
    %380 = vmatpush.msra.mxu0 %v351
    %381 = vmatpush.msra.mxu0 %v350
    %382 = vmatpush.msra.mxu0 %v349
    %383 = vmatpush.msra.mxu0 %v348
    %384 = vmatmul.f32.gmra.mxu0 %v347
    %v385 = vpop.f32.mrf.mxu0
    %v386 = vadd.f32 %v366, %v385
    %387 = vdwg.mxu0
    %v388 = vmax.f32 %v386, 0.0
    %v389 = vld [vmem:[#allocation10] sm:$0xff]
    %v390 = vld [vmem:[#allocation10 + $0x8] sm:$0xff]
    %v391 = vld [vmem:[#allocation10 + $0x10] sm:$0xff]
    %v392 = vld [vmem:[#allocation10 + $0x18] sm:$0xff]
    %v393 = vld [vmem:[#allocation10 + $0x20] sm:$0xff]
    %v394 = vld [vmem:[#allocation10 + $0x28] sm:$0xff]
    %v395 = vld [vmem:[#allocation10 + $0x30] sm:$0xff]
    %v396 = vld [vmem:[#allocation10 + $0x38] sm:$0xff]
    %v397 = vld [vmem:[#allocation10 + $0x40] sm:$0xff]
    %v398 = vld [vmem:[#allocation10 + $0x48] sm:$0xff]
    %v399 = vld [vmem:[#allocation10 + $0x50] sm:$0xff]
    %v400 = vld [vmem:[#allocation10 + $0x58] sm:$0xff]
    %v401 = vld [vmem:[#allocation10 + $0x60] sm:$0xff]
    %v402 = vld [vmem:[#allocation10 + $0x68] sm:$0xff]
    %v403 = vld [vmem:[#allocation10 + $0x70] sm:$0xff]
    %v404 = vld [vmem:[#allocation10 + $0x78] sm:$0xff]
    %v405 = vld [vmem:[%s7] sm:$0x1]
    %v407 = vperm.slane %v405, 0
    %409 = vmatpush.msra.mxu0 %v404
    %410 = vmatpush.msra.mxu0 %v403
    %411 = vmatpush.msra.mxu0 %v402
    %412 = vmatpush.msra.mxu0 %v401
    %413 = vmatpush.msra.mxu0 %v400
    %414 = vmatpush.msra.mxu0 %v399
    %415 = vmatpush.msra.mxu0 %v398
    %416 = vmatpush.msra.mxu0 %v397
    %417 = vmatpush.msra.mxu0 %v396
    %418 = vmatpush.msra.mxu0 %v395
    %419 = vmatpush.msra.mxu0 %v394
    %420 = vmatpush.msra.mxu0 %v393
    %421 = vmatpush.msra.mxu0 %v392
    %422 = vmatpush.msra.mxu0 %v391
    %423 = vmatpush.msra.mxu0 %v390
    %424 = vmatpush.msra.mxu0 %v389
    %425 = vmatmul.f32.gmra.mxu0 %v388
    %v426 = vpop.f32.mrf.mxu0
    %v427 = vadd.f32 %v407, %v426
    %428 = vdwg.mxu0
    %429 = vst [vmem:[#allocation11] sm:$0xff] %v427
    // Predicated region
    $region54: #{tpu_custom_call.1} parent=1 // pred_check
      _
    $region55: #{tpu_custom_call.1} parent=1 // pred_check_branch
      %431 = sbr.rel (0) target = $region57
    $region56: #{tpu_custom_call.1} parent=1 // pred_region
      %433 = vsyncadd [#allocation4], 0
      %s435 = sshll.u32 [#allocation11], 4
      %s436 = int_to_ptr.vmem [resolvable:$true] %s435
      %s437 = sshll.u32 %s8, 4
      %s438 = int_to_ptr.hbm [resolvable:$true] %s437
      %440 = dma.vmem_to_hbm [thread:$0]  %s436, 128, %s438, [#allocation4]
    $region57: #{tpu_custom_call.1} parent=1 // pred_fallthru
      _
    // Predicated region
    $region58: #{tpu_custom_call.1} parent=1 // pred_check
      _
    $region59: #{tpu_custom_call.1} parent=1 // pred_check_branch
      %442 = sbr.rel (0) target = $region61
    $region60: #{tpu_custom_call.1} parent=1 // pred_region
      %444 = dma.done [#allocation4], 128
    $region61: #{tpu_custom_call.1} parent=1 // pred_fallthru
      _
    %445 = vsyncpa [#allocation3], 1
    %446 = vsyncpa [#allocation6], 1
    %447 = vsyncpa [#allocation9], 1
    %448 = vsyncpa [#allocation4], 1

</llo_original>
